<compile_context>
chip_gen: v5e
topology: v5e:2x2
jax: 0.10.0
libtpu: 0.0.40
codegen_flags: <defaults>
</compile_context>

<pallas_src>
import jax
import jax.numpy as jnp
from jax.experimental import pallas as pl
from jax.experimental.pallas import tpu as pltpu


def _round_up(n: int, m: int) -> int:
    return ((n + m - 1) // m) * m


# --------------------------------------------------------------------------
# Kernel
# --------------------------------------------------------------------------
def _generator_kernel(x_ref, w1_ref, b1_ref, w2_ref, b2_ref, out_ref):
    # Hidden layer: linear1 + leaky_relu (slope 0.01, F.leaky_relu default).
    # Weights arrive pre-cast to bf16; only the streamed x tile is cast here.
    h = jnp.dot(x_ref[...].astype(jnp.bfloat16), w1_ref[...],
                preferred_element_type=jnp.float32) + b1_ref[...]
    h = jnp.maximum(h, 0.01 * h)          # leaky_relu, 2 VPU ops

    # Output layer: linear + tanh (tanh on the EUP, f32).
    y = jnp.dot(h.astype(jnp.bfloat16), w2_ref[...],
                preferred_element_type=jnp.float32) + b2_ref[...]
    out_ref[...] = jnp.tanh(y).astype(out_ref.dtype)


# --------------------------------------------------------------------------
# One-time parameter preparation (hoisted out of the per-call hot path)
# --------------------------------------------------------------------------
def prepare_params(w1, b1, w2, b2):
    """Pad the hidden dim to a multiple of 128 (zero pad is exactly neutral:
    padded w1 columns / b1 entries give h=0, leaky_relu(0)=0, and padded w2
    rows contribute nothing) and cast the weights to bf16 for the MXU.
    Do this once at init; the forward pass then runs pad/cast free."""
    _, H = w1.shape
    H_p = _round_up(H, 128)
    w1_p = jnp.pad(w1, ((0, 0), (0, H_p - H))).astype(jnp.bfloat16)
    b1_p = jnp.pad(b1, ((0, 0), (0, H_p - H))).astype(jnp.float32)
    w2_p = jnp.pad(w2, ((0, H_p - H), (0, 0))).astype(jnp.bfloat16)
    b2_p = b2.astype(jnp.float32)
    return w1_p, b1_p, w2_p, b2_p


# --------------------------------------------------------------------------
# VMEM budget: actual working set + headroom, capped for v7x (64 MiB / TC)
# --------------------------------------------------------------------------
def _vmem_budget_bytes(TB, Din, H_p, Dout):
    x_tile = TB * Din * 4            # f32 input tile
    out_tile = TB * Dout * 4         # f32 output tile
    h_tmp = TB * H_p * 4             # f32 intermediate (+ bf16 copy below)
    weights = (Din * H_p + H_p * Dout) * 2   # bf16
    biases = (H_p + Dout) * 4
    # Assume worst case: everything double-buffered, plus intermediates.
    need = 2 * (x_tile + out_tile + weights + biases) + 3 * h_tmp
    slack = 8 * 1024 * 1024
    return int(min(max(need + slack, 16 * 1024 * 1024), 48 * 1024 * 1024))


# --------------------------------------------------------------------------
# Forward wrapper
# --------------------------------------------------------------------------
def simple_generator_forward(x, w1_p, b1_p, w2_p, b2_p, *, block_batch=512):
    """x: [B, Din] f32; (w1_p, b1_p, w2_p, b2_p) from prepare_params().
    Returns [B, Dout] in x.dtype.  block_batch can be raised (1024-2048) on
    v5e/v6e (128 MiB VMEM); the default is sized with v7x headroom."""
    B, Din = x.shape
    Din_w, H_p = w1_p.shape
    Dout = w2_p.shape[1]
    assert Din == Din_w, "x feature dim must match prepared w1"

    # Balanced, padding-minimizing batch tiling; TB always a multiple of 8.
    n_tiles = pl.cdiv(B, block_batch)
    if n_tiles < 2 and _round_up(B, 8) >= 16:
        n_tiles = 2                   # >=2 steps so v7x megacore gets both TCs
    TB = _round_up(pl.cdiv(B, n_tiles), 8)
    B_p = n_tiles * TB

    x_p = jnp.pad(x, ((0, B_p - B), (0, 0))) if B_p != B else x

    def build(single_buffer_weights):
        resident = ({"pipeline_mode": pl.Buffered(1)}
                    if single_buffer_weights else {})
        in_specs = [
            # x: one batch tile per grid step (pipelined); lane dim = full Din.
            pl.BlockSpec((TB, Din), lambda i: (i, 0)),
            # Weights / biases: invariant blocks -> stay VMEM-resident.
            pl.BlockSpec((Din, H_p), lambda i: (0, 0), **resident),
            pl.BlockSpec((1, H_p), lambda i: (0, 0), **resident),
            pl.BlockSpec((H_p, Dout), lambda i: (0, 0), **resident),
            pl.BlockSpec((1, Dout), lambda i: (0, 0), **resident),
        ]
        return pl.pallas_call(
            _generator_kernel,
            out_shape=jax.ShapeDtypeStruct((B_p, Dout), x.dtype),
            grid_spec=pltpu.PrefetchScalarGridSpec(
                num_scalar_prefetch=0,
                grid=(n_tiles,),
                in_specs=in_specs,
                out_specs=pl.BlockSpec((TB, Dout), lambda i: (i, 0)),
            ),
            compiler_params=pltpu.CompilerParams(
                dimension_semantics=("parallel",),   # megacore sharding on v7x
                vmem_limit_bytes=_vmem_budget_bytes(TB, Din, H_p, Dout),
            ),
        )

    try:
        out_p = build(True)(x_p, w1_p, b1_p, w2_p, b2_p)
    except Exception:
        # pl.Buffered(1) not supported by this jax build -> default 2-deep.
        out_p = build(False)(x_p, w1_p, b1_p, w2_p, b2_p)

    return out_p[:B] if B_p != B else out_p


# --------------------------------------------------------------------------
# Reference + init helpers
# --------------------------------------------------------------------------
def init_params(key, input_dim, hidden_dims, output_dim, dtype=jnp.float32):
    """nn.Linear-style U(-1/sqrt(fan_in), 1/sqrt(fan_in)) init.
    Weights are stored [in_features, out_features] (transposed vs PyTorch)."""
    k1, k2, k3, k4 = jax.random.split(key, 4)
    bound1 = 1.0 / jnp.sqrt(input_dim)
    bound2 = 1.0 / jnp.sqrt(hidden_dims)
    w1 = jax.random.uniform(k1, (input_dim, hidden_dims), dtype, -bound1, bound1)
    b1 = jax.random.uniform(k2, (1, hidden_dims), dtype, -bound1, bound1)
    w2 = jax.random.uniform(k3, (hidden_dims, output_dim), dtype, -bound2, bound2)
    b2 = jax.random.uniform(k4, (1, output_dim), dtype, -bound2, bound2)
    return w1, b1, w2, b2


def reference_forward_f32(x, w1, b1, w2, b2):
    """Exact PyTorch (f32) semantics."""
    h = x @ w1 + b1
    h = jnp.where(h >= 0, h, 0.01 * h)
    return jnp.tanh(h @ w2 + b2)


def reference_forward_bf16(x, w1, b1, w2, b2):
    """Same math with bf16 matmul operands / f32 accumulation (matches kernel)."""
    h = jnp.dot(x.astype(jnp.bfloat16), w1.astype(jnp.bfloat16),
                preferred_element_type=jnp.float32) + b1
    h = jnp.where(h >= 0, h, 0.01 * h)
    y = jnp.dot(h.astype(jnp.bfloat16), w2.astype(jnp.bfloat16),
                preferred_element_type=jnp.float32) + b2
    return jnp.tanh(y)


def _check(out, x, params, atol_bf16=2e-3):
    assert jnp.allclose(out, reference_forward_bf16(x, *params),
                        atol=atol_bf16, rtol=atol_bf16)
    assert jnp.allclose(out, reference_forward_f32(x, *params),
                        atol=5e-2, rtol=5e-2)


if __name__ == "__main__":
    key = jax.random.PRNGKey(0)

    # --- Small test matching the module's toy shapes ---------------------
    batch, input_dim, hidden_dims, output_dim = 8, 16, 32, 8
    kx, kp = jax.random.split(key)
    x = jax.random.normal(kx, (batch, input_dim), jnp.float32)
    params = init_params(kp, input_dim, hidden_dims, output_dim)
    prepared = prepare_params(*params)

    out = simple_generator_forward(x, *prepared)
    out = jax.block_until_ready(out)
    assert out.shape == (batch, output_dim)
    _check(out, x, params)

    # --- Mid-size test: forced 2 grid steps, 128-aligned dims ------------
    b3, in3, hid3, out3 = 64, 128, 256, 128
    kx3, kp3 = jax.random.split(kp)
    x3 = jax.random.normal(kx3, (b3, in3), jnp.float32)
    p3 = init_params(kp3, in3, hid3, out3)
    y3 = simple_generator_forward(x3, *prepare_params(*p3))
    y3 = jax.block_until_ready(y3)
    assert y3.shape == (b3, out3)
    _check(y3, x3, p3)

    # --- Larger test: batch padding (520 -> 528), H padding (200 -> 256) -
    b2, in2, hid2, o2 = 520, 48, 200, 24
    kx2, kp2 = jax.random.split(kp3)
    x2 = jax.random.normal(kx2, (b2, in2), jnp.float32)
    p2 = init_params(kp2, in2, hid2, o2)
    y2 = simple_generator_forward(x2, *prepare_params(*p2))
    y2 = jax.block_until_ready(y2)
    assert y2.shape == (b2, o2)
    _check(y2, x2, p2)

    print("KERNEL_OK")
</pallas_src>

<mosaic_0001>
module attributes {stable_mosaic.version = 11 : i64} {
  func.func @_generator_kernel(%arg0: i32, %arg1: memref<8x16xf32, #tpu.memory_space<vmem>>, %arg2: memref<16x128xbf16, #tpu.memory_space<vmem>>, %arg3: memref<1x128xf32, #tpu.memory_space<vmem>>, %arg4: memref<128x8xbf16, #tpu.memory_space<vmem>>, %arg5: memref<1x8xf32, #tpu.memory_space<vmem>>, %arg6: memref<8x8xf32, #tpu.memory_space<vmem>>) attributes {dimension_semantics = [#tpu.dimension_semantics<parallel>], iteration_bounds = array<i64: 1>, scalar_prefetch = 0 : i64, scratch_operands = 0 : i64, tpu.core_type = #tpu.core_type<tc>, window_params = [{transform_indices = @transform_0, window_bounds = array<i64: 8, 16>}, {pipeline_mode = #tpu.pipeline_mode<synchronous>, transform_indices = @transform_1, window_bounds = array<i64: 16, 128>}, {pipeline_mode = #tpu.pipeline_mode<synchronous>, transform_indices = @transform_2, window_bounds = array<i64: 1, 128>}, {pipeline_mode = #tpu.pipeline_mode<synchronous>, transform_indices = @transform_3, window_bounds = array<i64: 128, 8>}, {pipeline_mode = #tpu.pipeline_mode<synchronous>, transform_indices = @transform_4, window_bounds = array<i64: 1, 8>}, {transform_indices = @transform_5, window_bounds = array<i64: 8, 8>}]} {
    %c0 = arith.constant 0 : index
    %c0_0 = arith.constant 0 : index
    %0 = vector.load %arg1[%c0, %c0_0] : memref<8x16xf32, #tpu.memory_space<vmem>>, vector<8x16xf32>
    %1 = arith.truncf %0 : vector<8x16xf32> to vector<8x16xbf16>
    %c0_1 = arith.constant 0 : index
    %c0_2 = arith.constant 0 : index
    %2 = vector.load %arg2[%c0_1, %c0_2] : memref<16x128xbf16, #tpu.memory_space<vmem>>, vector<16x128xbf16>
    %cst = arith.constant dense<0.000000e+00> : vector<8x128xf32>
    %3 = tpu.matmul %1, %2, %cst {dimension_numbers = #tpu.dot_dimension_numbers<[1], [0], [0], [1], [0, 0, 1, 1], [], []>} : vector<8x16xbf16>, vector<16x128xbf16>, vector<8x128xf32> -> vector<8x128xf32>
    %c0_3 = arith.constant 0 : index
    %c0_4 = arith.constant 0 : index
    %4 = vector.load %arg3[%c0_3, %c0_4] : memref<1x128xf32, #tpu.memory_space<vmem>>, vector<1x128xf32>
    %5 = vector.broadcast %4 : vector<1x128xf32> to vector<8x128xf32>
    %6 = arith.addf %3, %5 : vector<8x128xf32>
    %cst_5 = arith.constant 0.00999999977 : f32
    %7 = vector.broadcast %cst_5 : f32 to vector<8x128xf32>
    %8 = arith.mulf %7, %6 : vector<8x128xf32>
    %9 = arith.maximumf %6, %8 : vector<8x128xf32>
    %10 = arith.truncf %9 : vector<8x128xf32> to vector<8x128xbf16>
    %c0_6 = arith.constant 0 : index
    %c0_7 = arith.constant 0 : index
    %11 = vector.load %arg4[%c0_6, %c0_7] : memref<128x8xbf16, #tpu.memory_space<vmem>>, vector<128x8xbf16>
    %cst_8 = arith.constant dense<0.000000e+00> : vector<8x8xf32>
    %12 = tpu.matmul %10, %11, %cst_8 {dimension_numbers = #tpu.dot_dimension_numbers<[1], [0], [0], [1], [0, 0, 1, 1], [], []>} : vector<8x128xbf16>, vector<128x8xbf16>, vector<8x8xf32> -> vector<8x8xf32>
    %c0_9 = arith.constant 0 : index
    %c0_10 = arith.constant 0 : index
    %13 = vector.load %arg5[%c0_9, %c0_10] : memref<1x8xf32, #tpu.memory_space<vmem>>, vector<1x8xf32>
    %14 = vector.broadcast %13 : vector<1x8xf32> to vector<8x8xf32>
    %15 = arith.addf %12, %14 : vector<8x8xf32>
    %16 = math.tanh %15 : vector<8x8xf32>
    %c0_11 = arith.constant 0 : index
    %c0_12 = arith.constant 0 : index
    %17 = vector.load %arg6[%c0_11, %c0_12] : memref<8x8xf32, #tpu.memory_space<vmem>>, vector<8x8xf32>
    tpu.vector_store %arg6[%c0_11, %c0_12], %16 {strides = array<i32>} : memref<8x8xf32, #tpu.memory_space<vmem>>, vector<8x8xf32>,
    return
  }
  func.func @transform_0(%arg0: i32) -> (i32, i32) {
    %c0_i32 = arith.constant 0 : i32
    %c0_i32_0 = arith.constant 0 : i32
    return %arg0, %c0_i32 : i32, i32
  }
  func.func @transform_1(%arg0: i32) -> (i32, i32) {
    %c0_i32 = arith.constant 0 : i32
    %c0_i32_0 = arith.constant 0 : i32
    %c0_i32_1 = arith.constant 0 : i32
    return %c0_i32, %c0_i32_0 : i32, i32
  }
  func.func @transform_2(%arg0: i32) -> (i32, i32) {
    %c0_i32 = arith.constant 0 : i32
    %c0_i32_0 = arith.constant 0 : i32
    %c0_i32_1 = arith.constant 0 : i32
    return %c0_i32, %c0_i32_0 : i32, i32
  }
  func.func @transform_3(%arg0: i32) -> (i32, i32) {
    %c0_i32 = arith.constant 0 : i32
    %c0_i32_0 = arith.constant 0 : i32
    %c0_i32_1 = arith.constant 0 : i32
    return %c0_i32, %c0_i32_0 : i32, i32
  }
  func.func @transform_4(%arg0: i32) -> (i32, i32) {
    %c0_i32 = arith.constant 0 : i32
    %c0_i32_0 = arith.constant 0 : i32
    %c0_i32_1 = arith.constant 0 : i32
    return %c0_i32, %c0_i32_0 : i32, i32
  }
  func.func @transform_5(%arg0: i32) -> (i32, i32) {
    %c0_i32 = arith.constant 0 : i32
    %c0_i32_0 = arith.constant 0 : i32
    return %arg0, %c0_i32 : i32, i32
  }
}

module attributes {stable_mosaic.version = 11 : i64} {
  func.func @_generator_kernel(%arg0: i32, %arg1: memref<8x16xf32, #tpu.memory_space<vmem>>, %arg2: memref<16x128xbf16, #tpu.memory_space<vmem>>, %arg3: memref<1x128xf32, #tpu.memory_space<vmem>>, %arg4: memref<128x8xbf16, #tpu.memory_space<vmem>>, %arg5: memref<1x8xf32, #tpu.memory_space<vmem>>, %arg6: memref<8x8xf32, #tpu.memory_space<vmem>>) attributes {dimension_semantics = [#tpu.dimension_semantics<parallel>], iteration_bounds = array<i64: 1>, scalar_prefetch = 0 : i64, scratch_operands = 0 : i64, tpu.core_type = #tpu.core_type<tc>, window_params = [{transform_indices = @transform_0, window_bounds = array<i64: 8, 16>}, {pipeline_mode = #tpu.pipeline_mode<synchronous>, transform_indices = @transform_1, window_bounds = array<i64: 16, 128>}, {pipeline_mode = #tpu.pipeline_mode<synchronous>, transform_indices = @transform_2, window_bounds = array<i64: 1, 128>}, {pipeline_mode = #tpu.pipeline_mode<synchronous>, transform_indices = @transform_3, window_bounds = array<i64: 128, 8>}, {pipeline_mode = #tpu.pipeline_mode<synchronous>, transform_indices = @transform_4, window_bounds = array<i64: 1, 8>}, {transform_indices = @transform_5, window_bounds = array<i64: 8, 8>}]} {
    %c0 = arith.constant 0 : index
    %c0_0 = arith.constant 0 : index
    %0 = vector.load %arg1[%c0, %c0_0] : memref<8x16xf32, #tpu.memory_space<vmem>>, vector<8x16xf32>
    %1 = arith.truncf %0 : vector<8x16xf32> to vector<8x16xbf16>
    %c0_1 = arith.constant 0 : index
    %c0_2 = arith.constant 0 : index
    %2 = vector.load %arg2[%c0_1, %c0_2] : memref<16x128xbf16, #tpu.memory_space<vmem>>, vector<16x128xbf16>
    %cst = arith.constant dense<0.000000e+00> : vector<8x128xf32>
    %3 = tpu.matmul %1, %2, %cst {dimension_numbers = #tpu.dot_dimension_numbers<[1], [0], [0], [1], [0, 0, 1, 1], [], []>} : vector<8x16xbf16>, vector<16x128xbf16>, vector<8x128xf32> -> vector<8x128xf32>
    %c0_3 = arith.constant 0 : index
    %c0_4 = arith.constant 0 : index
    %4 = vector.load %arg3[%c0_3, %c0_4] : memref<1x128xf32, #tpu.memory_space<vmem>>, vector<1x128xf32>
    %5 = vector.broadcast %4 : vector<1x128xf32> to vector<8x128xf32>
    %6 = arith.addf %3, %5 : vector<8x128xf32>
    %cst_5 = arith.constant 0.00999999977 : f32
    %7 = vector.broadcast %cst_5 : f32 to vector<8x128xf32>
    %8 = arith.mulf %7, %6 : vector<8x128xf32>
    %9 = arith.maximumf %6, %8 : vector<8x128xf32>
    %10 = arith.truncf %9 : vector<8x128xf32> to vector<8x128xbf16>
    %c0_6 = arith.constant 0 : index
    %c0_7 = arith.constant 0 : index
    %11 = vector.load %arg4[%c0_6, %c0_7] : memref<128x8xbf16, #tpu.memory_space<vmem>>, vector<128x8xbf16>
    %cst_8 = arith.constant dense<0.000000e+00> : vector<8x8xf32>
    %12 = tpu.matmul %10, %11, %cst_8 {dimension_numbers = #tpu.dot_dimension_numbers<[1], [0], [0], [1], [0, 0, 1, 1], [], []>} : vector<8x128xbf16>, vector<128x8xbf16>, vector<8x8xf32> -> vector<8x8xf32>
    %c0_9 = arith.constant 0 : index
    %c0_10 = arith.constant 0 : index
    %13 = vector.load %arg5[%c0_9, %c0_10] : memref<1x8xf32, #tpu.memory_space<vmem>>, vector<1x8xf32>
    %14 = vector.broadcast %13 : vector<1x8xf32> to vector<8x8xf32>
    %15 = arith.addf %12, %14 : vector<8x8xf32>
    %16 = math.tanh %15 : vector<8x8xf32>
    %c0_11 = arith.constant 0 : index
    %c0_12 = arith.constant 0 : index
    %17 = vector.load %arg6[%c0_11, %c0_12] : memref<8x8xf32, #tpu.memory_space<vmem>>, vector<8x8xf32>
    tpu.vector_store %arg6[%c0_11, %c0_12], %16 {strides = array<i32>} : memref<8x8xf32, #tpu.memory_space<vmem>>, vector<8x8xf32>,
    return
  }
  func.func @transform_0(%arg0: i32) -> (i32, i32) {
    %c0_i32 = arith.constant 0 : i32
    %c0_i32_0 = arith.constant 0 : i32
    return %arg0, %c0_i32 : i32, i32
  }
  func.func @transform_1(%arg0: i32) -> (i32, i32) {
    %c0_i32 = arith.constant 0 : i32
    %c0_i32_0 = arith.constant 0 : i32
    %c0_i32_1 = arith.constant 0 : i32
    return %c0_i32, %c0_i32_0 : i32, i32
  }
  func.func @transform_2(%arg0: i32) -> (i32, i32) {
    %c0_i32 = arith.constant 0 : i32
    %c0_i32_0 = arith.constant 0 : i32
    %c0_i32_1 = arith.constant 0 : i32
    return %c0_i32, %c0_i32_0 : i32, i32
  }
  func.func @transform_3(%arg0: i32) -> (i32, i32) {
    %c0_i32 = arith.constant 0 : i32
    %c0_i32_0 = arith.constant 0 : i32
    %c0_i32_1 = arith.constant 0 : i32
    return %c0_i32, %c0_i32_0 : i32, i32
  }
  func.func @transform_4(%arg0: i32) -> (i32, i32) {
    %c0_i32 = arith.constant 0 : i32
    %c0_i32_0 = arith.constant 0 : i32
    %c0_i32_1 = arith.constant 0 : i32
    return %c0_i32, %c0_i32_0 : i32, i32
  }
  func.func @transform_5(%arg0: i32) -> (i32, i32) {
    %c0_i32 = arith.constant 0 : i32
    %c0_i32_0 = arith.constant 0 : i32
    return %arg0, %c0_i32 : i32, i32
  }
}

</mosaic_0001>

<llo_original>
// kernel: tpu_custom_call.1
$region0: #{tpu_custom_call.1}
  #allocation0 [shape = 'u32[]', space=smem, size = 0x4, offset = 0x4, fixed_abs, tag = 'smem constant byte address 0x4 - core index']
  #allocation1 [shape = 'u32[72,128]{1,0:T(1,128)}', space=vmem, size = 0x9000, scoped, tag = 'internal scratch']
  %s0 = inlined_call_operand.vmem [shape: f32[8,16], index: 0, kind: input, shape index: {}]
  %s1 = inlined_call_operand.vmem [shape: bf16[16,128], index: 1, kind: input, shape index: {}]
  %s2 = inlined_call_operand.vmem [shape: f32[1,128], index: 2, kind: input, shape index: {}]
  %s3 = inlined_call_operand.vmem [shape: bf16[128,8], index: 3, kind: input, shape index: {}]
  %s4 = inlined_call_operand.vmem [shape: f32[1,8], index: 4, kind: input, shape index: {}]
  %s5 = inlined_call_operand.hbm [shape: f32[8,8], index: 5, kind: output, shape index: {}]
  %s6 = sld [smem:[#allocation0]]
  $region30: #{tpu_custom_call.1} parent=0
    _
  %s8 = ssub.s32 1, %s6
  %s9 = scalar_select 0, %s8, %s6
  $region1: #{tpu_custom_call.1} parent=0
    #allocation2 [shape = 'u8[4096]{0}', space=vmem, size = 0x1000, scoped, tag = 'output window, operand 0, single buffered']
    #allocation3 [shape = 's32[1]{0}', space=sflag, size = 0x4, scoped, tag = 'scoped memory for tpu_custom_call.1']
    %10 = vsyncpa [#allocation3], 0
    // Predicated region
    $region2: #{tpu_custom_call.1} parent=1 // pred_check
      _
    $region3: #{tpu_custom_call.1} parent=1 // pred_check_branch
      %12 = sbr.rel (0) target = $region5
    $region4: #{tpu_custom_call.1} parent=1 // pred_region
      _
    $region5: #{tpu_custom_call.1} parent=1 // pred_fallthru
      _
    // Predicated region
    $region6: #{tpu_custom_call.1} parent=1 // pred_check
      _
    $region7: #{tpu_custom_call.1} parent=1 // pred_check_branch
      %14 = sbr.rel (0) target = $region9
    $region8: #{tpu_custom_call.1} parent=1 // pred_region
      _
    $region9: #{tpu_custom_call.1} parent=1 // pred_fallthru
      _
    // Predicated region
    $region10: #{tpu_custom_call.1} parent=1 // pred_check
      _
    $region11: #{tpu_custom_call.1} parent=1 // pred_check_branch
      %16 = sbr.rel (0) target = $region13
    $region12: #{tpu_custom_call.1} parent=1 // pred_region
      _
    $region13: #{tpu_custom_call.1} parent=1 // pred_fallthru
      _
    // Predicated region
    $region14: #{tpu_custom_call.1} parent=1 // pred_check
      _
    $region15: #{tpu_custom_call.1} parent=1 // pred_check_branch
      %18 = sbr.rel (0) target = $region17
    $region16: #{tpu_custom_call.1} parent=1 // pred_region
      _
    $region17: #{tpu_custom_call.1} parent=1 // pred_fallthru
      _
    // Predicated region
    $region18: #{tpu_custom_call.1} parent=1 // pred_check
      _
    $region19: #{tpu_custom_call.1} parent=1 // pred_check_branch
      %20 = sbr.rel (0) target = $region21
    $region20: #{tpu_custom_call.1} parent=1 // pred_region
      _
    $region21: #{tpu_custom_call.1} parent=1 // pred_fallthru
      _
    %v22 = vld [vmem:[%s0] sm:$0xff]
    %v23 = vpack.c.bf16 %v22, %v22
    %v24 = vld [vmem:[%s1] sm:$0xf]
    %v25 = vld [vmem:[%s1 + $0x4] sm:$0xf]
    %v26 = vld [vmem:[%s2] sm:$0x1]
    %v28 = vperm.slane %v26, 0
    %v32 = vunpack.c.l.b16 %v24
    %v33 = vunpack.c.l.b16 %v25
    %v34 = vpack.c.b16 %v33, %v32
    %vm36 = vcmask 130048
    %v38 = vsel %vm36, %v23, 0
    %40 = vmatpush.bf16.msra.mxu0 0
    %41 = vmatpush.bf16.msra.mxu0 0
    %42 = vmatpush.bf16.msra.mxu0 0
    %43 = vmatpush.bf16.msra.mxu0 0
    %44 = vmatpush.bf16.msra.mxu0 0
    %45 = vmatpush.bf16.msra.mxu0 0
    %46 = vmatpush.bf16.msra.mxu0 0
    %47 = vmatpush.bf16.msra.mxu0 %v34
    %48 = vmatmul.bf16.gmra.mxu0 %v38
    %v49 = vpop.f32.mrf.mxu0
    %v50 = vadd.f32 %v28, %v49
    %v51 = vpop.f32.mrf.mxu0
    %52 = vdwg.mxu0
    %v53 = vmul.f32 %v50, 0.01
    %v54 = vmax.f32 %v50, %v53
    %v55 = vpack.c.bf16 %v54, %v54
    %v56 = vld [vmem:[%s3] sm:$0xf]
    %v57 = vld [vmem:[%s3 + $0x4] sm:$0xf]
    %v58 = vld [vmem:[%s3 + $0x8] sm:$0xf]
    %v59 = vld [vmem:[%s3 + $0xc] sm:$0xf]
    %v60 = vld [vmem:[%s3 + $0x10] sm:$0xf]
    %v61 = vld [vmem:[%s3 + $0x14] sm:$0xf]
    %v62 = vld [vmem:[%s3 + $0x18] sm:$0xf]
    %v63 = vld [vmem:[%s3 + $0x1c] sm:$0xf]
    %v64 = vld [vmem:[%s3 + $0x20] sm:$0xf]
    %v65 = vld [vmem:[%s3 + $0x24] sm:$0xf]
    %v66 = vld [vmem:[%s3 + $0x28] sm:$0xf]
    %v67 = vld [vmem:[%s3 + $0x2c] sm:$0xf]
    %v68 = vld [vmem:[%s3 + $0x30] sm:$0xf]
    %v69 = vld [vmem:[%s3 + $0x34] sm:$0xf]
    %v70 = vld [vmem:[%s3 + $0x38] sm:$0xf]
    %v71 = vld [vmem:[%s3 + $0x3c] sm:$0xf]
    %v72 = vld [vmem:[%s4] sm:$0x1]
    %v74 = vperm.slane %v72, 0
    %v92 = vunpack.c.l.b16 %v56
    %v93 = vunpack.c.l.b16 %v57
    %v94 = vunpack.c.l.b16 %v58
    %v95 = vunpack.c.l.b16 %v59
    %v96 = vunpack.c.l.b16 %v60
    %v97 = vunpack.c.l.b16 %v61
    %v98 = vunpack.c.l.b16 %v62
    %v99 = vunpack.c.l.b16 %v63
    %v100 = vunpack.c.l.b16 %v64
    %v101 = vunpack.c.l.b16 %v65
    %v102 = vunpack.c.l.b16 %v66
    %v103 = vunpack.c.l.b16 %v67
    %v104 = vunpack.c.l.b16 %v68
    %v105 = vunpack.c.l.b16 %v69
    %v106 = vunpack.c.l.b16 %v70
    %v107 = vunpack.c.l.b16 %v71
    %v108 = vpack.c.b16 %v93, %v92
    %v109 = vpack.c.b16 %v95, %v94
    %v110 = vpack.c.b16 %v97, %v96
    %v111 = vpack.c.b16 %v99, %v98
    %v112 = vpack.c.b16 %v101, %v100
    %v113 = vpack.c.b16 %v103, %v102
    %v114 = vpack.c.b16 %v105, %v104
    %v115 = vpack.c.b16 %v107, %v106
    %124 = vmatpush.bf16.msra.mxu0 %v115
    %125 = vmatpush.bf16.msra.mxu0 %v114
    %126 = vmatpush.bf16.msra.mxu0 %v113
    %127 = vmatpush.bf16.msra.mxu0 %v112
    %128 = vmatpush.bf16.msra.mxu0 %v111
    %129 = vmatpush.bf16.msra.mxu0 %v110
    %130 = vmatpush.bf16.msra.mxu0 %v109
    %131 = vmatpush.bf16.msra.mxu0 %v108
    %132 = vmatmul.bf16.gmra.mxu0 %v55
    %v133 = vpop.f32.mrf.mxu0
    %v134 = vadd.f32 %v74, %v133
    %v135 = vpop.f32.mrf.mxu0
    %136 = vdwg.mxu0
    %v137 = vtanh.pop %v134
    %vm138 = vcmask 64512
    %139 = vst.msk [vmem:[#allocation2] sm:$0xff] %vm138, %v137
    // Predicated region
    $region22: #{tpu_custom_call.1} parent=1 // pred_check
      _
    $region23: #{tpu_custom_call.1} parent=1 // pred_check_branch
      %141 = sbr.rel (0) target = $region25
    $region24: #{tpu_custom_call.1} parent=1 // pred_region
      %143 = vsyncadd [#allocation3], 0
      %s145 = sshll.u32 [#allocation2], 4
      %s146 = int_to_ptr.vmem [resolvable:$true] %s145
      %s147 = sshll.u32 %s5, 4
      %s148 = int_to_ptr.hbm [resolvable:$true] %s147
      %150 = dma.vmem_to_hbm [thread:$0]  %s146, 128, %s148, [#allocation3]
    $region25: #{tpu_custom_call.1} parent=1 // pred_fallthru
      _
    // Predicated region
    $region26: #{tpu_custom_call.1} parent=1 // pred_check
      _
    $region27: #{tpu_custom_call.1} parent=1 // pred_check_branch
      %152 = sbr.rel (0) target = $region29
    $region28: #{tpu_custom_call.1} parent=1 // pred_region
      %154 = dma.done [#allocation3], 128
    $region29: #{tpu_custom_call.1} parent=1 // pred_fallthru
      _
    %155 = vsyncpa [#allocation3], 1

// kernel: tpu_custom_call.1
$region0: #{tpu_custom_call.1}
  #allocation0 [shape = 'u32[]', space=smem, size = 0x4, offset = 0x4, fixed_abs, tag = 'smem constant byte address 0x4 - core index']
  #allocation1 [shape = 'u32[72,128]{1,0:T(1,128)}', space=vmem, size = 0x9000, scoped, tag = 'internal scratch']
  %s0 = inlined_call_operand.vmem [shape: f32[8,16], index: 0, kind: input, shape index: {}]
  %s1 = inlined_call_operand.vmem [shape: bf16[16,128], index: 1, kind: input, shape index: {}]
  %s2 = inlined_call_operand.vmem [shape: f32[1,128], index: 2, kind: input, shape index: {}]
  %s3 = inlined_call_operand.vmem [shape: bf16[128,8], index: 3, kind: input, shape index: {}]
  %s4 = inlined_call_operand.vmem [shape: f32[1,8], index: 4, kind: input, shape index: {}]
  %s5 = inlined_call_operand.hbm [shape: f32[8,8], index: 5, kind: output, shape index: {}]
  %s6 = sld [smem:[#allocation0]]
  $region30: #{tpu_custom_call.1} parent=0
    _
  %s8 = ssub.s32 1, %s6
  %s9 = scalar_select 0, %s8, %s6
  $region1: #{tpu_custom_call.1} parent=0
    #allocation2 [shape = 'u8[4096]{0}', space=vmem, size = 0x1000, scoped, tag = 'output window, operand 0, single buffered']
    #allocation3 [shape = 's32[1]{0}', space=sflag, size = 0x4, scoped, tag = 'scoped memory for tpu_custom_call.1']
    %10 = vsyncpa [#allocation3], 0
    // Predicated region
    $region2: #{tpu_custom_call.1} parent=1 // pred_check
      _
    $region3: #{tpu_custom_call.1} parent=1 // pred_check_branch
      %12 = sbr.rel (0) target = $region5
    $region4: #{tpu_custom_call.1} parent=1 // pred_region
      _
    $region5: #{tpu_custom_call.1} parent=1 // pred_fallthru
      _
    // Predicated region
    $region6: #{tpu_custom_call.1} parent=1 // pred_check
      _
    $region7: #{tpu_custom_call.1} parent=1 // pred_check_branch
      %14 = sbr.rel (0) target = $region9
    $region8: #{tpu_custom_call.1} parent=1 // pred_region
      _
    $region9: #{tpu_custom_call.1} parent=1 // pred_fallthru
      _
    // Predicated region
    $region10: #{tpu_custom_call.1} parent=1 // pred_check
      _
    $region11: #{tpu_custom_call.1} parent=1 // pred_check_branch
      %16 = sbr.rel (0) target = $region13
    $region12: #{tpu_custom_call.1} parent=1 // pred_region
      _
    $region13: #{tpu_custom_call.1} parent=1 // pred_fallthru
      _
    // Predicated region
    $region14: #{tpu_custom_call.1} parent=1 // pred_check
      _
    $region15: #{tpu_custom_call.1} parent=1 // pred_check_branch
      %18 = sbr.rel (0) target = $region17
    $region16: #{tpu_custom_call.1} parent=1 // pred_region
      _
    $region17: #{tpu_custom_call.1} parent=1 // pred_fallthru
      _
    // Predicated region
    $region18: #{tpu_custom_call.1} parent=1 // pred_check
      _
    $region19: #{tpu_custom_call.1} parent=1 // pred_check_branch
      %20 = sbr.rel (0) target = $region21
    $region20: #{tpu_custom_call.1} parent=1 // pred_region
      _
    $region21: #{tpu_custom_call.1} parent=1 // pred_fallthru
      _
    %v22 = vld [vmem:[%s0] sm:$0xff]
    %v23 = vpack.c.bf16 %v22, %v22
    %v24 = vld [vmem:[%s1] sm:$0xf]
    %v25 = vld [vmem:[%s1 + $0x4] sm:$0xf]
    %v26 = vld [vmem:[%s2] sm:$0x1]
    %v28 = vperm.slane %v26, 0
    %v32 = vunpack.c.l.b16 %v24
    %v33 = vunpack.c.l.b16 %v25
    %v34 = vpack.c.b16 %v33, %v32
    %vm36 = vcmask 130048
    %v38 = vsel %vm36, %v23, 0
    %40 = vmatpush.bf16.msra.mxu0 0
    %41 = vmatpush.bf16.msra.mxu0 0
    %42 = vmatpush.bf16.msra.mxu0 0
    %43 = vmatpush.bf16.msra.mxu0 0
    %44 = vmatpush.bf16.msra.mxu0 0
    %45 = vmatpush.bf16.msra.mxu0 0
    %46 = vmatpush.bf16.msra.mxu0 0
    %47 = vmatpush.bf16.msra.mxu0 %v34
    %48 = vmatmul.bf16.gmra.mxu0 %v38
    %v49 = vpop.f32.mrf.mxu0
    %v50 = vadd.f32 %v28, %v49
    %v51 = vpop.f32.mrf.mxu0
    %52 = vdwg.mxu0
    %v53 = vmul.f32 %v50, 0.01
    %v54 = vmax.f32 %v50, %v53
    %v55 = vpack.c.bf16 %v54, %v54
    %v56 = vld [vmem:[%s3] sm:$0xf]
    %v57 = vld [vmem:[%s3 + $0x4] sm:$0xf]
    %v58 = vld [vmem:[%s3 + $0x8] sm:$0xf]
    %v59 = vld [vmem:[%s3 + $0xc] sm:$0xf]
    %v60 = vld [vmem:[%s3 + $0x10] sm:$0xf]
    %v61 = vld [vmem:[%s3 + $0x14] sm:$0xf]
    %v62 = vld [vmem:[%s3 + $0x18] sm:$0xf]
    %v63 = vld [vmem:[%s3 + $0x1c] sm:$0xf]
    %v64 = vld [vmem:[%s3 + $0x20] sm:$0xf]
    %v65 = vld [vmem:[%s3 + $0x24] sm:$0xf]
    %v66 = vld [vmem:[%s3 + $0x28] sm:$0xf]
    %v67 = vld [vmem:[%s3 + $0x2c] sm:$0xf]
    %v68 = vld [vmem:[%s3 + $0x30] sm:$0xf]
    %v69 = vld [vmem:[%s3 + $0x34] sm:$0xf]
    %v70 = vld [vmem:[%s3 + $0x38] sm:$0xf]
    %v71 = vld [vmem:[%s3 + $0x3c] sm:$0xf]
    %v72 = vld [vmem:[%s4] sm:$0x1]
    %v74 = vperm.slane %v72, 0
    %v92 = vunpack.c.l.b16 %v56
    %v93 = vunpack.c.l.b16 %v57
    %v94 = vunpack.c.l.b16 %v58
    %v95 = vunpack.c.l.b16 %v59
    %v96 = vunpack.c.l.b16 %v60
    %v97 = vunpack.c.l.b16 %v61
    %v98 = vunpack.c.l.b16 %v62
    %v99 = vunpack.c.l.b16 %v63
    %v100 = vunpack.c.l.b16 %v64
    %v101 = vunpack.c.l.b16 %v65
    %v102 = vunpack.c.l.b16 %v66
    %v103 = vunpack.c.l.b16 %v67
    %v104 = vunpack.c.l.b16 %v68
    %v105 = vunpack.c.l.b16 %v69
    %v106 = vunpack.c.l.b16 %v70
    %v107 = vunpack.c.l.b16 %v71
    %v108 = vpack.c.b16 %v93, %v92
    %v109 = vpack.c.b16 %v95, %v94
    %v110 = vpack.c.b16 %v97, %v96
    %v111 = vpack.c.b16 %v99, %v98
    %v112 = vpack.c.b16 %v101, %v100
    %v113 = vpack.c.b16 %v103, %v102
    %v114 = vpack.c.b16 %v105, %v104
    %v115 = vpack.c.b16 %v107, %v106
    %124 = vmatpush.bf16.msra.mxu0 %v115
    %125 = vmatpush.bf16.msra.mxu0 %v114
    %126 = vmatpush.bf16.msra.mxu0 %v113
    %127 = vmatpush.bf16.msra.mxu0 %v112
    %128 = vmatpush.bf16.msra.mxu0 %v111
    %129 = vmatpush.bf16.msra.mxu0 %v110
    %130 = vmatpush.bf16.msra.mxu0 %v109
    %131 = vmatpush.bf16.msra.mxu0 %v108
    %132 = vmatmul.bf16.gmra.mxu0 %v55
    %v133 = vpop.f32.mrf.mxu0
    %v134 = vadd.f32 %v74, %v133
    %v135 = vpop.f32.mrf.mxu0
    %136 = vdwg.mxu0
    %v137 = vtanh.pop %v134
    %vm138 = vcmask 64512
    %139 = vst.msk [vmem:[#allocation2] sm:$0xff] %vm138, %v137
    // Predicated region
    $region22: #{tpu_custom_call.1} parent=1 // pred_check
      _
    $region23: #{tpu_custom_call.1} parent=1 // pred_check_branch
      %141 = sbr.rel (0) target = $region25
    $region24: #{tpu_custom_call.1} parent=1 // pred_region
      %143 = vsyncadd [#allocation3], 0
      %s145 = sshll.u32 [#allocation2], 4
      %s146 = int_to_ptr.vmem [resolvable:$true] %s145
      %s147 = sshll.u32 %s5, 4
      %s148 = int_to_ptr.hbm [resolvable:$true] %s147
      %150 = dma.vmem_to_hbm [thread:$0]  %s146, 128, %s148, [#allocation3]
    $region25: #{tpu_custom_call.1} parent=1 // pred_fallthru
      _
    // Predicated region
    $region26: #{tpu_custom_call.1} parent=1 // pred_check
      _
    $region27: #{tpu_custom_call.1} parent=1 // pred_check_branch
      %152 = sbr.rel (0) target = $region29
    $region28: #{tpu_custom_call.1} parent=1 // pred_region
      %154 = dma.done [#allocation3], 128
    $region29: #{tpu_custom_call.1} parent=1 // pred_fallthru
      _
    %155 = vsyncpa [#allocation3], 1

</llo_original>
